<compile_context>
chip_gen: v5e
topology: v5e:2x2
jax: 0.10.0
libtpu: 0.0.40
codegen_flags: <defaults>
</compile_context>

<pallas_src>
import math

import jax
import jax.numpy as jnp
import numpy as np
from jax.experimental import pallas as pl
from jax.experimental.pallas import tpu as pltpu

NUM_HEADS = 4                       # self.linear.out_features
D_MODEL = 16
HEAD_DIM = D_MODEL // NUM_HEADS     # 4
SCALE = 1.0 / math.sqrt(HEAD_DIM)   # 0.5 (exact in binary)

QKV_COLS = 3 * NUM_HEADS * D_MODEL  # 192  (Q blocks | K blocks | V blocks)
C_COLS = (NUM_HEADS + 1) * D_MODEL  # 80   (4 scatter blocks | group-sum block)


def attn_kernel(x_ref, w_ref, b_ref, c_ref, o_ref):
    x = x_ref[...]                                            # (TB, 16) f32

    # One fused projection on the MXU (Q/K/V + all layout folds + 1/sqrt(d)).
    y = jnp.dot(x, w_ref[...], preferred_element_type=jnp.float32) + b_ref[...]
    qa = y[:, 0:64]        # Qall_m[b, 16m + (i*4+j)] = scale * q[b, m*4+i]
    ka = y[:, 64:128]      # Kall_m[b, 16m + (i*4+j)] = k[b, j*4+m]
    va = y[:, 128:192]     # Vall_j[b, 16j + (d*4+i)] = v[b, j*4+d]

    # Scores S[b, i*4+j] = sum_m scale*q[b,m*4+i] * k[b,j*4+m]   (full-width ops)
    s = qa[:, 0:16] * ka[:, 0:16]
    for m in range(1, NUM_HEADS):
        s = s + qa[:, 16 * m:16 * m + 16] * ka[:, 16 * m:16 * m + 16]

    # Softmax over j: subtract row-global max (constant within each j-group,
    # so identical to per-group max subtraction), exp on the EUP.
    e = jnp.exp(s - jnp.max(s, axis=1, keepdims=True))        # (TB, 16)

    # One constant matmul realizes both the "A -> output layout" scatter for
    # each j and the per-(b,i) softmax denominator (broadcast to output layout).
    eb = jnp.dot(e, c_ref[...], preferred_element_type=jnp.float32)  # (TB, 80)

    # numer[b, d*4+i] = sum_j E[b, i*4+j] * v[b, j*4+d]
    numer = eb[:, 0:16] * va[:, 0:16]
    for j in range(1, NUM_HEADS):
        numer = numer + eb[:, 16 * j:16 * j + 16] * va[:, 16 * j:16 * j + 16]

    denom = eb[:, 64:80]                                       # (TB, 16)
    o_ref[...] = numer / denom                                 # one full-tile store


def prepare_params(wqT, bq, wkT, bk, wvT, bv):
    """Fold head transposes, V gather order and the 1/sqrt(d) scale into the
    weights (one-time, host-side).  Returns (W_all, b_all, C)."""
    Pq = np.zeros((D_MODEL, NUM_HEADS * D_MODEL), np.float32)   # (16, 64)
    Pk = np.zeros((D_MODEL, NUM_HEADS * D_MODEL), np.float32)
    Pv = np.zeros((D_MODEL, NUM_HEADS * D_MODEL), np.float32)
    for m in range(NUM_HEADS):
        for i in range(HEAD_DIM):
            for j in range(NUM_HEADS):
                col = 16 * m + i * 4 + j
                Pq[m * HEAD_DIM + i, col] = SCALE           # scale folded here
                Pk[j * HEAD_DIM + m, col] = 1.0
    for j in range(NUM_HEADS):
        for d in range(HEAD_DIM):
            for i in range(HEAD_DIM):
                Pv[j * HEAD_DIM + d, 16 * j + d * HEAD_DIM + i] = 1.0

    # In-kernel constant: [Ba_0 | Ba_1 | Ba_2 | Ba_3 | Gd]  (16, 80)
    C = np.zeros((D_MODEL, C_COLS), np.float32)
    for j in range(NUM_HEADS):
        for i in range(HEAD_DIM):
            src = i * 4 + j
            for d in range(HEAD_DIM):
                dst = d * HEAD_DIM + i
                C[src, 16 * j + dst] = 1.0      # scatter E into output layout
                C[src, 64 + dst] = 1.0          # group-sum (softmax denominator)

    Pq, Pk, Pv, C = map(jnp.asarray, (Pq, Pk, Pv, C))
    w_all = jnp.concatenate([wqT @ Pq, wkT @ Pk, wvT @ Pv], axis=1)   # (16, 192)
    b_all = jnp.concatenate([bq @ Pq, bk @ Pk, bv @ Pv], axis=1)      # (1, 192)
    return w_all, b_all, C


@jax.jit
def model_forward(x, w_all, b_all, c_mat):
    B = x.shape[0]
    tile_b = min(B, 512)                 # keep well inside scoped VMEM on v7x
    grid = (pl.cdiv(B, tile_b),)
    return pl.pallas_call(
        attn_kernel,
        out_shape=jax.ShapeDtypeStruct((B, D_MODEL), jnp.float32),
        grid=grid,
        in_specs=[
            pl.BlockSpec((tile_b, D_MODEL), lambda i: (i, 0)),
            pl.BlockSpec((D_MODEL, QKV_COLS), lambda i: (0, 0)),
            pl.BlockSpec((1, QKV_COLS), lambda i: (0, 0)),
            pl.BlockSpec((D_MODEL, C_COLS), lambda i: (0, 0)),
        ],
        out_specs=pl.BlockSpec((tile_b, D_MODEL), lambda i: (i, 0)),
        compiler_params=pltpu.CompilerParams(
            dimension_semantics=("parallel",)),
    )(x, w_all, b_all, c_mat)


def ref_forward(x, wqT, bq, wkT, bk, wvT, bv):
    """Pure-JAX mirror of the PyTorch forward (dropout in eval mode)."""
    q = x @ wqT + bq
    k = x @ wkT + bk
    v = x @ wvT + bv
    B = x.shape[0]
    qh = q.reshape(B, 1, NUM_HEADS, HEAD_DIM).transpose(0, 1, 3, 2)
    kh = k.reshape(B, 1, NUM_HEADS, HEAD_DIM).transpose(0, 1, 3, 2)
    vh = v.reshape(B, 1, NUM_HEADS, HEAD_DIM)
    qk = jnp.einsum('bxih,bxhj->bxij', qh, kh) * SCALE
    a = jax.nn.softmax(qk, axis=-1)
    out = jnp.einsum('bxij,bxjd->bxid', a, vh)
    out = out.transpose(0, 1, 3, 2)
    return out.reshape(B, D_MODEL)


if __name__ == "__main__":
    key = jax.random.PRNGKey(0)
    ks = jax.random.split(key, 8)

    B, F = 16, 16   # matches x1 = torch.randn(16, 16) in the reference script
    x = jax.random.normal(ks[0], (B, F), dtype=jnp.float32)

    # Deterministic parameter init (PyTorch Linear weight shape is (out, in);
    # we store the transposed (in, out) form the folding consumes).
    bound = 1.0 / math.sqrt(F)
    wqT = jax.random.uniform(ks[1], (F, D_MODEL), jnp.float32, -bound, bound)
    wkT = jax.random.uniform(ks[2], (F, D_MODEL), jnp.float32, -bound, bound)
    wvT = jax.random.uniform(ks[3], (F, D_MODEL), jnp.float32, -bound, bound)
    bq = jax.random.uniform(ks[4], (1, D_MODEL), jnp.float32, -bound, bound)
    bk = jax.random.uniform(ks[5], (1, D_MODEL), jnp.float32, -bound, bound)
    bv = jax.random.uniform(ks[6], (1, D_MODEL), jnp.float32, -bound, bound)
    # (self.linear of the PyTorch module is only used for its out_features=4;
    #  it contributes no compute, so no weights are needed.)

    w_all, b_all, c_mat = prepare_params(wqT, bq, wkT, bk, wvT, bv)

    out = model_forward(x, w_all, b_all, c_mat)
    jax.block_until_ready(out)

    ref = ref_forward(x, wqT, bq, wkT, bk, wvT, bv)
    np.testing.assert_allclose(np.asarray(out), np.asarray(ref),
                               rtol=1e-3, atol=1e-3)

    print("KERNEL_OK")
</pallas_src>

<mosaic_0001>
module attributes {stable_mosaic.version = 11 : i64} {
  func.func @attn_kernel(%arg0: i32, %arg1: memref<16x16xf32, #tpu.memory_space<vmem>>, %arg2: memref<16x192xf32, #tpu.memory_space<vmem>>, %arg3: memref<1x192xf32, #tpu.memory_space<vmem>>, %arg4: memref<16x80xf32, #tpu.memory_space<vmem>>, %arg5: memref<16x16xf32, #tpu.memory_space<vmem>>) attributes {dimension_semantics = [#tpu.dimension_semantics<parallel>], iteration_bounds = array<i64: 1>, scalar_prefetch = 0 : i64, scratch_operands = 0 : i64, tpu.core_type = #tpu.core_type<tc>, window_params = [{transform_indices = @transform_0, window_bounds = array<i64: 16, 16>}, {pipeline_mode = #tpu.pipeline_mode<synchronous>, transform_indices = @transform_1, window_bounds = array<i64: 16, 192>}, {pipeline_mode = #tpu.pipeline_mode<synchronous>, transform_indices = @transform_2, window_bounds = array<i64: 1, 192>}, {pipeline_mode = #tpu.pipeline_mode<synchronous>, transform_indices = @transform_3, window_bounds = array<i64: 16, 80>}, {transform_indices = @transform_4, window_bounds = array<i64: 16, 16>}]} {
    %c0 = arith.constant 0 : index
    %c0_0 = arith.constant 0 : index
    %0 = vector.load %arg1[%c0, %c0_0] : memref<16x16xf32, #tpu.memory_space<vmem>>, vector<16x16xf32>
    %c0_1 = arith.constant 0 : index
    %c0_2 = arith.constant 0 : index
    %1 = vector.load %arg2[%c0_1, %c0_2] : memref<16x192xf32, #tpu.memory_space<vmem>>, vector<16x192xf32>
    %cst = arith.constant dense<0.000000e+00> : vector<16x192xf32>
    %2 = tpu.matmul %0, %1, %cst {dimension_numbers = #tpu.dot_dimension_numbers<[1], [0], [0], [1], [0, 0, 1, 1], [], []>} : vector<16x16xf32>, vector<16x192xf32>, vector<16x192xf32> -> vector<16x192xf32>
    %c0_3 = arith.constant 0 : index
    %c0_4 = arith.constant 0 : index
    %3 = vector.load %arg3[%c0_3, %c0_4] : memref<1x192xf32, #tpu.memory_space<vmem>>, vector<1x192xf32>
    %4 = vector.broadcast %3 : vector<1x192xf32> to vector<16x192xf32>
    %5 = arith.addf %2, %4 : vector<16x192xf32>
    %6 = vector.extract_strided_slice %5 {offsets = [0, 0], sizes = [16, 64], strides = [1, 1]} : vector<16x192xf32> to vector<16x64xf32>
    %7 = vector.extract_strided_slice %5 {offsets = [0, 64], sizes = [16, 64], strides = [1, 1]} : vector<16x192xf32> to vector<16x64xf32>
    %8 = vector.extract_strided_slice %5 {offsets = [0, 128], sizes = [16, 64], strides = [1, 1]} : vector<16x192xf32> to vector<16x64xf32>
    %9 = vector.extract_strided_slice %6 {offsets = [0, 0], sizes = [16, 16], strides = [1, 1]} : vector<16x64xf32> to vector<16x16xf32>
    %10 = vector.extract_strided_slice %7 {offsets = [0, 0], sizes = [16, 16], strides = [1, 1]} : vector<16x64xf32> to vector<16x16xf32>
    %11 = arith.mulf %9, %10 : vector<16x16xf32>
    %12 = vector.extract_strided_slice %6 {offsets = [0, 16], sizes = [16, 16], strides = [1, 1]} : vector<16x64xf32> to vector<16x16xf32>
    %13 = vector.extract_strided_slice %7 {offsets = [0, 16], sizes = [16, 16], strides = [1, 1]} : vector<16x64xf32> to vector<16x16xf32>
    %14 = arith.mulf %12, %13 : vector<16x16xf32>
    %15 = arith.addf %11, %14 : vector<16x16xf32>
    %16 = vector.extract_strided_slice %6 {offsets = [0, 32], sizes = [16, 16], strides = [1, 1]} : vector<16x64xf32> to vector<16x16xf32>
    %17 = vector.extract_strided_slice %7 {offsets = [0, 32], sizes = [16, 16], strides = [1, 1]} : vector<16x64xf32> to vector<16x16xf32>
    %18 = arith.mulf %16, %17 : vector<16x16xf32>
    %19 = arith.addf %15, %18 : vector<16x16xf32>
    %20 = vector.extract_strided_slice %6 {offsets = [0, 48], sizes = [16, 16], strides = [1, 1]} : vector<16x64xf32> to vector<16x16xf32>
    %21 = vector.extract_strided_slice %7 {offsets = [0, 48], sizes = [16, 16], strides = [1, 1]} : vector<16x64xf32> to vector<16x16xf32>
    %22 = arith.mulf %20, %21 : vector<16x16xf32>
    %23 = arith.addf %19, %22 : vector<16x16xf32>
    %cst_5 = arith.constant dense<0xFF800000> : vector<16xf32>
    %24 = vector.multi_reduction <maximumf>, %23, %cst_5 [1] : vector<16x16xf32> to vector<16xf32>
    %25 = vector.shape_cast %24 : vector<16xf32> to vector<16x1xf32>
    %26 = vector.broadcast %25 : vector<16x1xf32> to vector<16x16xf32>
    %27 = arith.subf %23, %26 : vector<16x16xf32>
    %28 = math.exp %27 : vector<16x16xf32>
    %c0_6 = arith.constant 0 : index
    %c0_7 = arith.constant 0 : index
    %29 = vector.load %arg4[%c0_6, %c0_7] : memref<16x80xf32, #tpu.memory_space<vmem>>, vector<16x80xf32>
    %cst_8 = arith.constant dense<0.000000e+00> : vector<16x80xf32>
    %30 = tpu.matmul %28, %29, %cst_8 {dimension_numbers = #tpu.dot_dimension_numbers<[1], [0], [0], [1], [0, 0, 1, 1], [], []>} : vector<16x16xf32>, vector<16x80xf32>, vector<16x80xf32> -> vector<16x80xf32>
    %31 = vector.extract_strided_slice %30 {offsets = [0, 0], sizes = [16, 16], strides = [1, 1]} : vector<16x80xf32> to vector<16x16xf32>
    %32 = vector.extract_strided_slice %8 {offsets = [0, 0], sizes = [16, 16], strides = [1, 1]} : vector<16x64xf32> to vector<16x16xf32>
    %33 = arith.mulf %31, %32 : vector<16x16xf32>
    %34 = vector.extract_strided_slice %30 {offsets = [0, 16], sizes = [16, 16], strides = [1, 1]} : vector<16x80xf32> to vector<16x16xf32>
    %35 = vector.extract_strided_slice %8 {offsets = [0, 16], sizes = [16, 16], strides = [1, 1]} : vector<16x64xf32> to vector<16x16xf32>
    %36 = arith.mulf %34, %35 : vector<16x16xf32>
    %37 = arith.addf %33, %36 : vector<16x16xf32>
    %38 = vector.extract_strided_slice %30 {offsets = [0, 32], sizes = [16, 16], strides = [1, 1]} : vector<16x80xf32> to vector<16x16xf32>
    %39 = vector.extract_strided_slice %8 {offsets = [0, 32], sizes = [16, 16], strides = [1, 1]} : vector<16x64xf32> to vector<16x16xf32>
    %40 = arith.mulf %38, %39 : vector<16x16xf32>
    %41 = arith.addf %37, %40 : vector<16x16xf32>
    %42 = vector.extract_strided_slice %30 {offsets = [0, 48], sizes = [16, 16], strides = [1, 1]} : vector<16x80xf32> to vector<16x16xf32>
    %43 = vector.extract_strided_slice %8 {offsets = [0, 48], sizes = [16, 16], strides = [1, 1]} : vector<16x64xf32> to vector<16x16xf32>
    %44 = arith.mulf %42, %43 : vector<16x16xf32>
    %45 = arith.addf %41, %44 : vector<16x16xf32>
    %46 = vector.extract_strided_slice %30 {offsets = [0, 64], sizes = [16, 16], strides = [1, 1]} : vector<16x80xf32> to vector<16x16xf32>
    %47 = arith.divf %45, %46 : vector<16x16xf32>
    %c0_9 = arith.constant 0 : index
    %c0_10 = arith.constant 0 : index
    %48 = vector.load %arg5[%c0_9, %c0_10] : memref<16x16xf32, #tpu.memory_space<vmem>>, vector<16x16xf32>
    tpu.vector_store %arg5[%c0_9, %c0_10], %47 {strides = array<i32>} : memref<16x16xf32, #tpu.memory_space<vmem>>, vector<16x16xf32>,
    return
  }
  func.func @transform_0(%arg0: i32) -> (i32, i32) {
    %c0_i32 = arith.constant 0 : i32
    %c0_i32_0 = arith.constant 0 : i32
    return %arg0, %c0_i32 : i32, i32
  }
  func.func @transform_1(%arg0: i32) -> (i32, i32) {
    %c0_i32 = arith.constant 0 : i32
    %c0_i32_0 = arith.constant 0 : i32
    %c0_i32_1 = arith.constant 0 : i32
    return %c0_i32, %c0_i32_0 : i32, i32
  }
  func.func @transform_2(%arg0: i32) -> (i32, i32) {
    %c0_i32 = arith.constant 0 : i32
    %c0_i32_0 = arith.constant 0 : i32
    %c0_i32_1 = arith.constant 0 : i32
    return %c0_i32, %c0_i32_0 : i32, i32
  }
  func.func @transform_3(%arg0: i32) -> (i32, i32) {
    %c0_i32 = arith.constant 0 : i32
    %c0_i32_0 = arith.constant 0 : i32
    %c0_i32_1 = arith.constant 0 : i32
    return %c0_i32, %c0_i32_0 : i32, i32
  }
  func.func @transform_4(%arg0: i32) -> (i32, i32) {
    %c0_i32 = arith.constant 0 : i32
    %c0_i32_0 = arith.constant 0 : i32
    return %arg0, %c0_i32 : i32, i32
  }
}

</mosaic_0001>

<llo_original>
// kernel: model_forward.1
$region0: #{model_forward.1}
  #allocation0 [shape = 'u32[]', space=smem, size = 0x4, offset = 0x4, fixed_abs, tag = 'smem constant byte address 0x4 - core index']
  #allocation1 [shape = 'u32[72,128]{1,0:T(1,128)}', space=vmem, size = 0x9000, scoped, tag = 'internal scratch']
  %s0 = inlined_call_operand.hbm [shape: f32[16,16], index: 0, kind: input, shape index: {}]
  %s1 = inlined_call_operand.hbm [shape: f32[16,192], index: 1, kind: input, shape index: {}]
  %s2 = inlined_call_operand.hbm [shape: f32[1,192], index: 2, kind: input, shape index: {}]
  %s3 = inlined_call_operand.hbm [shape: f32[16,80], index: 3, kind: input, shape index: {}]
  %s4 = inlined_call_operand.hbm [shape: f32[16,16], index: 4, kind: output, shape index: {}]
  %s5 = sld [smem:[#allocation0]]
  $region42: #{model_forward.1} parent=0
    _
  %s7 = ssub.s32 1, %s5
  %s8 = scalar_select 0, %s7, %s5
  $region1: #{model_forward.1} parent=0
    #allocation2 [shape = 'u8[8192]{0}', space=vmem, size = 0x2000, scoped, tag = 'input window, operand 0, single buffered']
    #allocation3 [shape = 's32[1]{0}', space=sflag, size = 0x4, scoped, tag = 'scoped memory for model_forward.1']
    #allocation4 [shape = 's32[1]{0}', space=sflag, size = 0x4, scoped, tag = 'scoped memory for model_forward.1']
    #allocation5 [shape = 'u8[16384]{0}', space=vmem, size = 0x4000, scoped, tag = 'input window, operand 1, single buffered']
    #allocation6 [shape = 's32[1]{0}', space=sflag, size = 0x4, scoped, tag = 'scoped memory for model_forward.1']
    #allocation7 [shape = 'u8[1024]{0}', space=vmem, size = 0x400, scoped, tag = 'input window, operand 2, single buffered']
    #allocation8 [shape = 'u8[8192]{0}', space=vmem, size = 0x2000, scoped, tag = 'input window, operand 3, single buffered']
    #allocation9 [shape = 's32[1]{0}', space=sflag, size = 0x4, scoped, tag = 'scoped memory for model_forward.1']
    #allocation10 [shape = 'u8[8192]{0}', space=vmem, size = 0x2000, scoped, tag = 'output window, operand 0, single buffered']
    %9 = vsyncpa [#allocation3], 0
    %10 = vsyncpa [#allocation6], 0
    %11 = vsyncpa [#allocation9], 0
    %12 = vsyncpa [#allocation4], 0
    // Predicated region
    $region2: #{model_forward.1} parent=1 // pred_check
      _
    $region3: #{model_forward.1} parent=1 // pred_check_branch
      %14 = sbr.rel (0) target = $region5
    $region4: #{model_forward.1} parent=1 // pred_region
      %16 = vsyncadd [#allocation3], 0
      %s17 = sshll.u32 %s0, 4
      %s18 = int_to_ptr.hbm [resolvable:$true] %s17
      %s19 = sshll.u32 [#allocation2], 4
      %s20 = int_to_ptr.vmem [resolvable:$true] %s19
      %25 = dma.hbm_to_vmem [thread:$0]  %s18, 256, %s20, [#allocation3], 128, 128, 8
    $region5: #{model_forward.1} parent=1 // pred_fallthru
      _
    // Predicated region
    $region6: #{model_forward.1} parent=1 // pred_check
      _
    $region7: #{model_forward.1} parent=1 // pred_check_branch
      %27 = sbr.rel (0) target = $region9
    $region8: #{model_forward.1} parent=1 // pred_region
      %29 = vsyncadd [#allocation6], 0
      %s30 = sshll.u32 %s1, 4
      %s31 = int_to_ptr.hbm [resolvable:$true] %s30
      %s32 = sshll.u32 [#allocation5], 4
      %s33 = int_to_ptr.vmem [resolvable:$true] %s32
      %38 = dma.hbm_to_vmem [thread:$0]  %s31, 512, %s33, [#allocation6], 256, 256, 16
    $region9: #{model_forward.1} parent=1 // pred_fallthru
      _
    // Predicated region
    $region10: #{model_forward.1} parent=1 // pred_check
      _
    $region11: #{model_forward.1} parent=1 // pred_check_branch
      %40 = sbr.rel (0) target = $region13
    $region12: #{model_forward.1} parent=1 // pred_region
      %42 = vsyncadd [#allocation6], 0
      %s44 = sshll.u32 %s2, 4
      %s45 = int_to_ptr.hbm [resolvable:$true] %s44
      %s46 = sshll.u32 [#allocation7], 4
      %s47 = int_to_ptr.vmem [resolvable:$true] %s46
      %49 = dma.hbm_to_vmem [thread:$0]  %s45, 32, %s47, [#allocation6]
    $region13: #{model_forward.1} parent=1 // pred_fallthru
      _
    // Predicated region
    $region14: #{model_forward.1} parent=1 // pred_check
      _
    $region15: #{model_forward.1} parent=1 // pred_check_branch
      %51 = sbr.rel (0) target = $region17
    $region16: #{model_forward.1} parent=1 // pred_region
      %53 = vsyncadd [#allocation9], 0
      %s54 = sshll.u32 %s3, 4
      %s55 = int_to_ptr.hbm [resolvable:$true] %s54
      %s56 = sshll.u32 [#allocation8], 4
      %s57 = int_to_ptr.vmem [resolvable:$true] %s56
      %62 = dma.hbm_to_vmem [thread:$0]  %s55, 256, %s57, [#allocation9], 128, 128, 8
    $region17: #{model_forward.1} parent=1 // pred_fallthru
      _
    // Predicated region
    $region18: #{model_forward.1} parent=1 // pred_check
      _
    $region19: #{model_forward.1} parent=1 // pred_check_branch
      %64 = sbr.rel (0) target = $region21
    $region20: #{model_forward.1} parent=1 // pred_region
      %66 = dma.done [#allocation3], 256
    $region21: #{model_forward.1} parent=1 // pred_fallthru
      _
    // Predicated region
    $region22: #{model_forward.1} parent=1 // pred_check
      _
    $region23: #{model_forward.1} parent=1 // pred_check_branch
      %68 = sbr.rel (0) target = $region25
    $region24: #{model_forward.1} parent=1 // pred_region
      %70 = dma.done [#allocation6], 512
    $region25: #{model_forward.1} parent=1 // pred_fallthru
      _
    // Predicated region
    $region26: #{model_forward.1} parent=1 // pred_check
      _
    $region27: #{model_forward.1} parent=1 // pred_check_branch
      %72 = sbr.rel (0) target = $region29
    $region28: #{model_forward.1} parent=1 // pred_region
      %74 = dma.done [#allocation6], 32
    $region29: #{model_forward.1} parent=1 // pred_fallthru
      _
    // Predicated region
    $region30: #{model_forward.1} parent=1 // pred_check
      _
    $region31: #{model_forward.1} parent=1 // pred_check_branch
      %76 = sbr.rel (0) target = $region33
    $region32: #{model_forward.1} parent=1 // pred_region
      %78 = dma.done [#allocation9], 256
    $region33: #{model_forward.1} parent=1 // pred_fallthru
      _
    %v79 = vld [vmem:[#allocation2] sm:$0xff]
    %v80 = vld [vmem:[#allocation2 + $0x8] sm:$0xff]
    %v81 = vld [vmem:[#allocation5] sm:$0xff]
    %v82 = vld [vmem:[#allocation5 + $0x8] sm:$0xff]
    %v83 = vld [vmem:[#allocation5 + $0x10] sm:$0xff]
    %v84 = vld [vmem:[#allocation5 + $0x18] sm:$0xff]
    %v85 = vld [vmem:[#allocation7] sm:$0x3]
    %v87 = vperm.slane %v85, 0
    %v88 = vperm.slane %v85, 1
    %vm91 = vcmask 130048
    %v93 = vsel %vm91, %v79, 0
    %v96 = vsel %vm91, %v80, 0
    %98 = vmatpush.msra.mxu0 0.0
    %99 = vmatpush.msra.mxu0 0.0
    %100 = vmatpush.msra.mxu0 0.0
    %101 = vmatpush.msra.mxu0 0.0
    %102 = vmatpush.msra.mxu0 0.0
    %103 = vmatpush.msra.mxu0 0.0
    %104 = vmatpush.msra.mxu0 0.0
    %105 = vmatpush.msra.mxu0 0.0
    %106 = vmatpush.msra.mxu0 0.0
    %107 = vmatpush.msra.mxu0 0.0
    %108 = vmatpush.msra.mxu0 0.0
    %109 = vmatpush.msra.mxu0 0.0
    %110 = vmatpush.msra.mxu0 0.0
    %111 = vmatpush.msra.mxu0 0.0
    %112 = vmatpush.msra.mxu0 %v83
    %113 = vmatpush.msra.mxu0 %v81
    %114 = vmatmul.f32.gmra.mxu0 %v93
    %v115 = vpop.f32.mrf.mxu0
    %v116 = vadd.f32 %v87, %v115
    %117 = vmatmul.f32.gmra.mxu0 %v96
    %v118 = vpop.f32.mrf.mxu0
    %v119 = vadd.f32 %v87, %v118
    %120 = vdwg.mxu0
    %121 = vmatpush.msra.mxu0 0.0
    %122 = vmatpush.msra.mxu0 0.0
    %123 = vmatpush.msra.mxu0 0.0
    %124 = vmatpush.msra.mxu0 0.0
    %125 = vmatpush.msra.mxu0 0.0
    %126 = vmatpush.msra.mxu0 0.0
    %127 = vmatpush.msra.mxu0 0.0
    %128 = vmatpush.msra.mxu0 0.0
    %129 = vmatpush.msra.mxu0 0.0
    %130 = vmatpush.msra.mxu0 0.0
    %131 = vmatpush.msra.mxu0 0.0
    %132 = vmatpush.msra.mxu0 0.0
    %133 = vmatpush.msra.mxu0 0.0
    %134 = vmatpush.msra.mxu0 0.0
    %135 = vmatpush.msra.mxu0 %v84
    %136 = vmatpush.msra.mxu0 %v82
    %137 = vmatmul.f32.gmra.mxu0 %v93
    %v138 = vpop.f32.mrf.mxu0
    %v139 = vadd.f32 %v88, %v138
    %140 = vmatmul.f32.gmra.mxu0 %v96
    %v141 = vpop.f32.mrf.mxu0
    %v142 = vadd.f32 %v88, %v141
    %143 = vdwg.mxu0
    %146 = vrot.lane.b32.xlu0 %v116, 64
    %v147 = vpop.permute.xlu0 %146
    %148 = vrot.lane.b32.xlu0 %v119, 64
    %v149 = vpop.permute.xlu0 %148
    %v152 = vmul.f32 %v116, %v147
    %v153 = vmul.f32 %v119, %v149
    %156 = vrot.lane.b32.xlu0 %v152, 112
    %v157 = vpop.permute.xlu0 %156
    %158 = vrot.lane.b32.xlu0 %v153, 112
    %v159 = vpop.permute.xlu0 %158
    %v162 = vadd.f32 %v152, %v157
    %v163 = vadd.f32 %v153, %v159
    %164 = vrot.lane.b32.xlu0 %v152, 96
    %v165 = vpop.permute.xlu0 %164
    %166 = vrot.lane.b32.xlu0 %v153, 96
    %v167 = vpop.permute.xlu0 %166
    %v170 = vadd.f32 %v162, %v165
    %v171 = vadd.f32 %v163, %v167
    %172 = vrot.lane.b32.xlu0 %v152, 80
    %v173 = vpop.permute.xlu0 %172
    %174 = vrot.lane.b32.xlu0 %v153, 80
    %v175 = vpop.permute.xlu0 %174
    %v178 = vadd.f32 %v170, %v173
    %v179 = vadd.f32 %v171, %v175
    %v180 = vsel %vm91, %v178, -inf
    %181 = vmax.xlane.f32.xlu0 %v180
    %v182 = vpop.xlane.xlu0 %181
    %v183 = vsel %vm91, %v179, -inf
    %184 = vmax.xlane.f32.xlu0 %v183
    %v185 = vpop.xlane.xlu0 %184
    %v186 = vsub.f32 %v178, %v182
    %v187 = vsub.f32 %v179, %v185
    %v188 = vmul.f32 %v186, 1.442695
    %v189 = vpow.pop %v188
    %v190 = vmul.f32 %v187, 1.442695
    %v191 = vpow.pop %v190
    %v192 = vld [vmem:[#allocation8] sm:$0xff]
    %v193 = vld [vmem:[#allocation8 + $0x8] sm:$0xff]
    %v195 = vsel %vm91, %v189, 0
    %v198 = vsel %vm91, %v191, 0
    %200 = vmatpush.msra.mxu0 0.0
    %201 = vmatpush.msra.mxu0 0.0
    %202 = vmatpush.msra.mxu0 0.0
    %203 = vmatpush.msra.mxu0 0.0
    %204 = vmatpush.msra.mxu0 0.0
    %205 = vmatpush.msra.mxu0 0.0
    %206 = vmatpush.msra.mxu0 0.0
    %207 = vmatpush.msra.mxu0 0.0
    %208 = vmatpush.msra.mxu0 0.0
    %209 = vmatpush.msra.mxu0 0.0
    %210 = vmatpush.msra.mxu0 0.0
    %211 = vmatpush.msra.mxu0 0.0
    %212 = vmatpush.msra.mxu0 0.0
    %213 = vmatpush.msra.mxu0 0.0
    %214 = vmatpush.msra.mxu0 %v193
    %215 = vmatpush.msra.mxu0 %v192
    %216 = vmatmul.f32.gmra.mxu0 %v195
    %v217 = vpop.f32.mrf.mxu0
    %v218 = vadd.f32 0.0, %v217
    %219 = vmatmul.f32.gmra.mxu0 %v198
    %v220 = vpop.f32.mrf.mxu0
    %v221 = vadd.f32 0.0, %v220
    %222 = vdwg.mxu0
    %v223 = vmul.f32 %v218, %v139
    %v224 = vmul.f32 %v221, %v142
    %227 = vrot.lane.b32.xlu0 %v223, 112
    %v228 = vpop.permute.xlu0 %227
    %229 = vrot.lane.b32.xlu0 %v224, 112
    %v230 = vpop.permute.xlu0 %229
    %v233 = vadd.f32 %v223, %v228
    %v234 = vadd.f32 %v224, %v230
    %235 = vrot.lane.b32.xlu0 %v223, 96
    %v236 = vpop.permute.xlu0 %235
    %237 = vrot.lane.b32.xlu0 %v224, 96
    %v238 = vpop.permute.xlu0 %237
    %v241 = vadd.f32 %v233, %v236
    %v242 = vadd.f32 %v234, %v238
    %243 = vrot.lane.b32.xlu0 %v223, 80
    %v244 = vpop.permute.xlu0 %243
    %245 = vrot.lane.b32.xlu0 %v224, 80
    %v246 = vpop.permute.xlu0 %245
    %v249 = vadd.f32 %v241, %v244
    %v250 = vadd.f32 %v242, %v246
    %253 = vrot.lane.b32.xlu0 %v218, 64
    %v254 = vpop.permute.xlu0 %253
    %255 = vrot.lane.b32.xlu0 %v221, 64
    %v256 = vpop.permute.xlu0 %255
    %v259 = vrcp.pop %v254
    %v260 = vmul.f32 %v254, %v259
    %v261 = vsub.f32 1.0, %v260
    %v262 = vmul.f32 %v259, %v261
    %v263 = vadd.f32 %v259, %v262
    %vm264 = vweird.f32 %v254
    %vm265 = vweird.f32 %v259
    %vm266 = vmor %vm264, %vm265
    %v267 = vsel %vm266, %v259, %v263
    %v268 = vand.u32 2147483647, %v254
    %vm269 = vcmp.eq.f32.partialorder %v268, 8.507059e+37
    %v270 = vand.u32 %v254, 2147483648
    %v271 = vor.u32 1.1754944e-38, %v270
    %v272 = vsel %vm269, %v271, %v267
    %v273 = vmul.f32 %v249, %v272
    %v274 = vrcp.pop %v256
    %v275 = vmul.f32 %v256, %v274
    %v276 = vsub.f32 1.0, %v275
    %v277 = vmul.f32 %v274, %v276
    %v278 = vadd.f32 %v274, %v277
    %vm279 = vweird.f32 %v256
    %vm280 = vweird.f32 %v274
    %vm281 = vmor %vm279, %vm280
    %v282 = vsel %vm281, %v274, %v278
    %v283 = vand.u32 2147483647, %v256
    %vm284 = vcmp.eq.f32.partialorder %v283, 8.507059e+37
    %v285 = vand.u32 %v256, 2147483648
    %v286 = vor.u32 1.1754944e-38, %v285
    %v287 = vsel %vm284, %v286, %v282
    %v288 = vmul.f32 %v250, %v287
    %289 = vst.msk [vmem:[#allocation10] sm:$0xff] %vm91, %v273
    %290 = vst.msk [vmem:[#allocation10 + $0x8] sm:$0xff] %vm91, %v288
    // Predicated region
    $region34: #{model_forward.1} parent=1 // pred_check
      _
    $region35: #{model_forward.1} parent=1 // pred_check_branch
      %292 = sbr.rel (0) target = $region37
    $region36: #{model_forward.1} parent=1 // pred_region
      %294 = vsyncadd [#allocation4], 0
      %s295 = sshll.u32 [#allocation10], 4
      %s296 = int_to_ptr.vmem [resolvable:$true] %s295
      %s297 = sshll.u32 %s4, 4
      %s298 = int_to_ptr.hbm [resolvable:$true] %s297
      %303 = dma.vmem_to_hbm [thread:$0]  %s296, 256, %s298, [#allocation4], 128, 128, 8
    $region37: #{model_forward.1} parent=1 // pred_fallthru
      _
    // Predicated region
    $region38: #{model_forward.1} parent=1 // pred_check
      _
    $region39: #{model_forward.1} parent=1 // pred_check_branch
      %305 = sbr.rel (0) target = $region41
    $region40: #{model_forward.1} parent=1 // pred_region
      %307 = dma.done [#allocation4], 256
    $region41: #{model_forward.1} parent=1 // pred_fallthru
      _
    %308 = vsyncpa [#allocation3], 1
    %309 = vsyncpa [#allocation6], 1
    %310 = vsyncpa [#allocation9], 1
    %311 = vsyncpa [#allocation4], 1

</llo_original>
